<compile_context>
chip_gen: v5e
topology: v5e:2x2
jax: 0.10.0
libtpu: 0.0.40
codegen_flags: <defaults>
</compile_context>

<pallas_src>
import functools
import math

import jax
import jax.numpy as jnp
import numpy as np
from jax.experimental import pallas as pl
from jax.experimental.pallas import tpu as pltpu


def _tf_energy_kernel(x_ref, p_ref, o_ref, *, C, eps, sig_beta):
    # x_ref: (ROWS, TF)   p_ref: (ROWS, 2C+3)   o_ref: (ROWS, TF)
    # p columns: 0 gamma, 1 beta, 2 slope, 3 const, 4.. banded fc coefficients.
    rows = x_ref.shape[0]

    x = x_ref[...].astype(jnp.float32)                         # (ROWS, TF)
    gamma = p_ref[:, 0:1]                                      # (ROWS, 1)
    betap = p_ref[:, 1:2]
    slope = p_ref[:, 2:3]

    # ---- InstanceNorm #1 (affine folded into the normalization scale). ------
    mu = jnp.mean(x, axis=-1, keepdims=True)                   # (ROWS, 1)
    xc = x - mu
    var = jnp.mean(xc * xc, axis=-1, keepdims=True)            # (ROWS, 1)
    scale1 = jax.lax.rsqrt(var + eps) * gamma                  # (ROWS, 1)
    xn = xc * scale1 + betap                                   # (ROWS, TF)

    # ---- Per-row RMS energy, analytic from the already-available stats:
    #      mean(xn^2) = gamma^2 * var / (var + eps) + beta^2. ------------------
    e = jnp.sqrt(scale1 * scale1 * var + betap * betap)        # (ROWS, 1)

    # ---- g = fc2(fc1(e)), collapsed to one C->C affine map (no nonlinearity
    #      between the two Linear layers), evaluated as a banded matvec over
    #      each group of C consecutive rows via sublane rolls.  Coefficients
    #      for rows outside a row's own group are exactly zero, so roll
    #      wrap-around at block edges is harmless. ---------------------------
    g = p_ref[:, 3:4]                                          # const = W2@b1 + b2
    for d in range(2 * C - 1):
        shift = d - (C - 1)                                    # tap reads e[row + shift]
        e_sh = e if shift == 0 else pltpu.roll(e, shift=(-shift) % rows, axis=0)
        g = g + p_ref[:, 4 + d:5 + d] * e_sh

    # ---- LearnableSigmoid gate: a = sig_beta * sigmoid(slope * g). ----------
    # TODO(synk): LearnableSigmoid is not defined in the provided spec; the
    # standard beta*sigmoid(slope_c*g) with beta = 1 and learnable per-channel
    # slope is used.
    a = sig_beta / (1.0 + jnp.exp(-slope * g))                 # (ROWS, 1)

    # ---- v = relu(IN(x * xn / a)).  The positive per-row scale 1/a is folded
    #      into the second InstanceNorm's eps, so no gate multiply/divide over
    #      the full tile is needed. ------------------------------------------
    qk = x * xn                                                # (ROWS, TF)
    mu2 = jnp.mean(qk, axis=-1, keepdims=True)
    qc = qk - mu2
    var2 = jnp.mean(qc * qc, axis=-1, keepdims=True)
    scale2 = jax.lax.rsqrt(var2 + (eps * a) * a) * gamma
    o_ref[...] = jnp.maximum(qc * scale2 + betap, 0.0).astype(o_ref.dtype)


def _choose_rows(rows_total, C, TF, target_bytes=1 << 20):
    """Rows per grid step: multiple of 8 (full sublanes) and of C (FC groups)."""
    unit = 8 * C // math.gcd(8, C)
    if rows_total <= unit:
        return rows_total                       # one small block (== full rows)
    rows = max(unit, (target_bytes // (TF * 4)) // unit * unit)
    # Prefer >= 2 grid steps so the "parallel" axis can land on both v7x cores.
    half = ((rows_total + 1) // 2 + unit - 1) // unit * unit
    return min(rows, half)


def tf_energy(x, params, *, eps=1e-5, sig_beta=1.0):
    """x: (B, C, T, F) float32. params: dict of module parameters."""
    B, C, T, F = x.shape
    TF = T * F
    rows_total = B * C

    # ---- Free wrapper-side re-layouts (contiguous reshapes + tiny param math).
    xk = x.reshape(rows_total, TF)

    gamma = params["in_gamma"].astype(jnp.float32)             # (C,)
    betap = params["in_beta"].astype(jnp.float32)              # (C,)
    slope = params["slope"].astype(jnp.float32)                # (C,)
    w1 = params["fc1_w"].astype(jnp.float32)                   # (2C, C)
    b1 = params["fc1_b"].astype(jnp.float32)                   # (2C,)
    w2 = params["fc2_w"].astype(jnp.float32)                   # (C, 2C)
    b2 = params["fc2_b"].astype(jnp.float32)                   # (C,)

    # Collapse fc2(fc1(.)) (no nonlinearity in between) into one affine map.
    A = w2 @ w1                                                # (C, C)
    const = w2 @ b1 + b2                                       # (C,)

    # Banded coefficients: for row r = b*C + c,
    #   g[r] = const[c] + sum_d coef[c, d] * e[r + d - (C-1)], coef zero outside
    # the row's own channel group.
    offs = jnp.arange(2 * C - 1) - (C - 1)                     # (2C-1,)
    src = jnp.arange(C)[:, None] + offs[None, :]               # (C, 2C-1)
    valid = (src >= 0) & (src < C)
    coef = jnp.where(valid,
                     jnp.take_along_axis(A, jnp.clip(src, 0, C - 1), axis=1),
                     0.0)                                      # (C, 2C-1)

    # One packed per-channel parameter block, expanded over the batch.
    pchan = jnp.concatenate([gamma[:, None], betap[:, None], slope[:, None],
                             const[:, None], coef], axis=1)    # (C, 2C+3)
    prow = jnp.tile(pchan, (B, 1)).astype(jnp.float32)         # (B*C, 2C+3)
    P = prow.shape[1]

    rows = _choose_rows(rows_total, C, TF)
    grid = (pl.cdiv(rows_total, rows),)

    kernel = functools.partial(_tf_energy_kernel, C=C, eps=eps, sig_beta=sig_beta)
    out = pl.pallas_call(
        kernel,
        out_shape=jax.ShapeDtypeStruct((rows_total, TF), x.dtype),
        grid=grid,
        in_specs=[
            pl.BlockSpec((rows, TF), lambda i: (i, 0)),        # x rows
            pl.BlockSpec((rows, P), lambda i: (i, 0)),         # packed per-row params
        ],
        out_specs=pl.BlockSpec((rows, TF), lambda i: (i, 0)),
        compiler_params=pltpu.CompilerParams(dimension_semantics=("parallel",)),
    )(xk, prow)
    return out.reshape(B, C, T, F)


def _reference(x, params, *, eps=1e-5, sig_beta=1.0):
    """Pure-JAX reference replicating the PyTorch forward exactly."""
    B, C, T, F = x.shape
    gamma = params["in_gamma"][None, :, None, None]
    beta = params["in_beta"][None, :, None, None]

    def inorm(z):
        mu = jnp.mean(z, axis=(2, 3), keepdims=True)
        var = jnp.mean((z - mu) ** 2, axis=(2, 3), keepdims=True)
        return (z - mu) / jnp.sqrt(var + eps) * gamma + beta

    x0 = x
    xn = inorm(x)
    e = jnp.sqrt(jnp.mean(xn.reshape(B, C, T * F) ** 2, axis=-1))     # (B, C)
    h = e @ params["fc1_w"].T + params["fc1_b"]                       # (B, 2C)
    g = h @ params["fc2_w"].T + params["fc2_b"]                       # (B, C)
    a = sig_beta * jax.nn.sigmoid(params["slope"][None, :] * g)       # (B, C)
    gate = a[:, :, None, None]
    k = xn / gate
    qk = x0 * k
    return jax.nn.relu(inorm(qk))


if __name__ == "__main__":
    B, C, T, F = 2, 4, 16, 16

    key = jax.random.PRNGKey(0)
    ks = jax.random.split(key, 8)
    x = jax.random.normal(ks[0], (B, C, T, F), jnp.float32)

    bound1 = 1.0 / np.sqrt(C)
    bound2 = 1.0 / np.sqrt(2 * C)
    params = dict(
        in_gamma=1.0 + 0.1 * jax.random.normal(ks[1], (C,), jnp.float32),
        in_beta=0.1 * jax.random.normal(ks[2], (C,), jnp.float32),
        fc1_w=jax.random.uniform(ks[3], (2 * C, C), jnp.float32, -bound1, bound1),
        fc1_b=jax.random.uniform(ks[4], (2 * C,), jnp.float32, -bound1, bound1),
        fc2_w=jax.random.uniform(ks[5], (C, 2 * C), jnp.float32, -bound2, bound2),
        fc2_b=jax.random.uniform(ks[6], (C,), jnp.float32, -bound2, bound2),
        slope=1.0 + 0.1 * jax.random.normal(ks[7], (C,), jnp.float32),
    )

    out = jax.block_until_ready(tf_energy(x, params))
    ref = jax.block_until_ready(_reference(x, params))

    assert out.shape == (B, C, T, F), out.shape
    np.testing.assert_allclose(np.asarray(out), np.asarray(ref),
                               rtol=1e-4, atol=1e-5)
    print("KERNEL_OK")
</pallas_src>

<mosaic_0001>
module attributes {stable_mosaic.version = 11 : i64} {
  func.func @_tf_energy_kernel(%arg0: i32, %arg1: memref<8x256xf32, #tpu.memory_space<vmem>>, %arg2: memref<8x11xf32, #tpu.memory_space<vmem>>, %arg3: memref<8x256xf32, #tpu.memory_space<vmem>>) attributes {dimension_semantics = [#tpu.dimension_semantics<parallel>], iteration_bounds = array<i64: 1>, scalar_prefetch = 0 : i64, scratch_operands = 0 : i64, tpu.core_type = #tpu.core_type<tc>, window_params = [{transform_indices = @transform_0, window_bounds = array<i64: 8, 256>}, {transform_indices = @transform_1, window_bounds = array<i64: 8, 11>}, {transform_indices = @transform_2, window_bounds = array<i64: 8, 256>}]} {
    %c0 = arith.constant 0 : index
    %c0_0 = arith.constant 0 : index
    %0 = vector.load %arg1[%c0, %c0_0] : memref<8x256xf32, #tpu.memory_space<vmem>>, vector<8x256xf32>
    %c0_1 = arith.constant 0 : index
    %c0_2 = arith.constant 0 : index
    %1 = vector.load %arg2[%c0_1, %c0_2] : memref<8x11xf32, #tpu.memory_space<vmem>>, vector<8x1xf32>
    %c0_3 = arith.constant 0 : index
    %c1 = arith.constant 1 : index
    %2 = vector.load %arg2[%c0_3, %c1] : memref<8x11xf32, #tpu.memory_space<vmem>>, vector<8x1xf32>
    %c0_4 = arith.constant 0 : index
    %c2 = arith.constant 2 : index
    %3 = vector.load %arg2[%c0_4, %c2] : memref<8x11xf32, #tpu.memory_space<vmem>>, vector<8x1xf32>
    %cst = arith.constant dense<0.000000e+00> : vector<8xf32>
    %4 = vector.multi_reduction <add>, %0, %cst [1] : vector<8x256xf32> to vector<8xf32>
    %5 = vector.shape_cast %4 : vector<8xf32> to vector<8x1xf32>
    %cst_5 = arith.constant 2.560000e+02 : f32
    %6 = vector.broadcast %cst_5 : f32 to vector<8x1xf32>
    %7 = arith.divf %5, %6 : vector<8x1xf32>
    %8 = vector.broadcast %7 : vector<8x1xf32> to vector<8x256xf32>
    %9 = arith.subf %0, %8 : vector<8x256xf32>
    %10 = arith.mulf %9, %9 : vector<8x256xf32>
    %cst_6 = arith.constant dense<0.000000e+00> : vector<8xf32>
    %11 = vector.multi_reduction <add>, %10, %cst_6 [1] : vector<8x256xf32> to vector<8xf32>
    %12 = vector.shape_cast %11 : vector<8xf32> to vector<8x1xf32>
    %cst_7 = arith.constant 2.560000e+02 : f32
    %13 = vector.broadcast %cst_7 : f32 to vector<8x1xf32>
    %14 = arith.divf %12, %13 : vector<8x1xf32>
    %cst_8 = arith.constant 9.99999974E-6 : f32
    %15 = vector.broadcast %cst_8 : f32 to vector<8x1xf32>
    %16 = arith.addf %14, %15 : vector<8x1xf32>
    %17 = math.rsqrt %16 : vector<8x1xf32>
    %18 = arith.mulf %17, %1 : vector<8x1xf32>
    %19 = vector.broadcast %18 : vector<8x1xf32> to vector<8x256xf32>
    %20 = arith.mulf %9, %19 : vector<8x256xf32>
    %21 = vector.broadcast %2 : vector<8x1xf32> to vector<8x256xf32>
    %22 = arith.addf %20, %21 : vector<8x256xf32>
    %23 = arith.mulf %18, %18 : vector<8x1xf32>
    %24 = arith.mulf %23, %14 : vector<8x1xf32>
    %25 = arith.mulf %2, %2 : vector<8x1xf32>
    %26 = arith.addf %24, %25 : vector<8x1xf32>
    %27 = math.sqrt %26 : vector<8x1xf32>
    %c0_9 = arith.constant 0 : index
    %c3 = arith.constant 3 : index
    %28 = vector.load %arg2[%c0_9, %c3] : memref<8x11xf32, #tpu.memory_space<vmem>>, vector<8x1xf32>
    %c3_i32 = arith.constant 3 : i32
    %29 = tpu.dynamic_rotate %27 by %c3_i32 dim 0 : vector<8x1xf32>, i32 -> vector<8x1xf32>
    %c0_10 = arith.constant 0 : index
    %c4 = arith.constant 4 : index
    %30 = vector.load %arg2[%c0_10, %c4] : memref<8x11xf32, #tpu.memory_space<vmem>>, vector<8x1xf32>
    %31 = arith.mulf %30, %29 : vector<8x1xf32>
    %32 = arith.addf %28, %31 : vector<8x1xf32>
    %c2_i32 = arith.constant 2 : i32
    %33 = tpu.dynamic_rotate %27 by %c2_i32 dim 0 : vector<8x1xf32>, i32 -> vector<8x1xf32>
    %c0_11 = arith.constant 0 : index
    %c5 = arith.constant 5 : index
    %34 = vector.load %arg2[%c0_11, %c5] : memref<8x11xf32, #tpu.memory_space<vmem>>, vector<8x1xf32>
    %35 = arith.mulf %34, %33 : vector<8x1xf32>
    %36 = arith.addf %32, %35 : vector<8x1xf32>
    %c1_i32 = arith.constant 1 : i32
    %37 = tpu.dynamic_rotate %27 by %c1_i32 dim 0 : vector<8x1xf32>, i32 -> vector<8x1xf32>
    %c0_12 = arith.constant 0 : index
    %c6 = arith.constant 6 : index
    %38 = vector.load %arg2[%c0_12, %c6] : memref<8x11xf32, #tpu.memory_space<vmem>>, vector<8x1xf32>
    %39 = arith.mulf %38, %37 : vector<8x1xf32>
    %40 = arith.addf %36, %39 : vector<8x1xf32>
    %c0_13 = arith.constant 0 : index
    %c7 = arith.constant 7 : index
    %41 = vector.load %arg2[%c0_13, %c7] : memref<8x11xf32, #tpu.memory_space<vmem>>, vector<8x1xf32>
    %42 = arith.mulf %41, %27 : vector<8x1xf32>
    %43 = arith.addf %40, %42 : vector<8x1xf32>
    %c7_i32 = arith.constant 7 : i32
    %44 = tpu.dynamic_rotate %27 by %c7_i32 dim 0 : vector<8x1xf32>, i32 -> vector<8x1xf32>
    %c0_14 = arith.constant 0 : index
    %c8 = arith.constant 8 : index
    %45 = vector.load %arg2[%c0_14, %c8] : memref<8x11xf32, #tpu.memory_space<vmem>>, vector<8x1xf32>
    %46 = arith.mulf %45, %44 : vector<8x1xf32>
    %47 = arith.addf %43, %46 : vector<8x1xf32>
    %c6_i32 = arith.constant 6 : i32
    %48 = tpu.dynamic_rotate %27 by %c6_i32 dim 0 : vector<8x1xf32>, i32 -> vector<8x1xf32>
    %c0_15 = arith.constant 0 : index
    %c9 = arith.constant 9 : index
    %49 = vector.load %arg2[%c0_15, %c9] : memref<8x11xf32, #tpu.memory_space<vmem>>, vector<8x1xf32>
    %50 = arith.mulf %49, %48 : vector<8x1xf32>
    %51 = arith.addf %47, %50 : vector<8x1xf32>
    %c5_i32 = arith.constant 5 : i32
    %52 = tpu.dynamic_rotate %27 by %c5_i32 dim 0 : vector<8x1xf32>, i32 -> vector<8x1xf32>
    %c0_16 = arith.constant 0 : index
    %c10 = arith.constant 10 : index
    %53 = vector.load %arg2[%c0_16, %c10] : memref<8x11xf32, #tpu.memory_space<vmem>>, vector<8x1xf32>
    %54 = arith.mulf %53, %52 : vector<8x1xf32>
    %55 = arith.addf %51, %54 : vector<8x1xf32>
    %cst_17 = arith.constant 0.000000e+00 : f32
    %56 = vector.broadcast %cst_17 : f32 to vector<8x1xf32>
    %57 = arith.subf %56, %3 : vector<8x1xf32>
    %58 = arith.mulf %57, %55 : vector<8x1xf32>
    %59 = math.exp %58 : vector<8x1xf32>
    %cst_18 = arith.constant 1.000000e+00 : f32
    %60 = vector.broadcast %cst_18 : f32 to vector<8x1xf32>
    %61 = arith.addf %60, %59 : vector<8x1xf32>
    %cst_19 = arith.constant 1.000000e+00 : f32
    %62 = vector.broadcast %cst_19 : f32 to vector<8x1xf32>
    %63 = arith.divf %62, %61 : vector<8x1xf32>
    %64 = arith.mulf %0, %22 : vector<8x256xf32>
    %cst_20 = arith.constant dense<0.000000e+00> : vector<8xf32>
    %65 = vector.multi_reduction <add>, %64, %cst_20 [1] : vector<8x256xf32> to vector<8xf32>
    %66 = vector.shape_cast %65 : vector<8xf32> to vector<8x1xf32>
    %cst_21 = arith.constant 2.560000e+02 : f32
    %67 = vector.broadcast %cst_21 : f32 to vector<8x1xf32>
    %68 = arith.divf %66, %67 : vector<8x1xf32>
    %69 = vector.broadcast %68 : vector<8x1xf32> to vector<8x256xf32>
    %70 = arith.subf %64, %69 : vector<8x256xf32>
    %71 = arith.mulf %70, %70 : vector<8x256xf32>
    %cst_22 = arith.constant dense<0.000000e+00> : vector<8xf32>
    %72 = vector.multi_reduction <add>, %71, %cst_22 [1] : vector<8x256xf32> to vector<8xf32>
    %73 = vector.shape_cast %72 : vector<8xf32> to vector<8x1xf32>
    %cst_23 = arith.constant 2.560000e+02 : f32
    %74 = vector.broadcast %cst_23 : f32 to vector<8x1xf32>
    %75 = arith.divf %73, %74 : vector<8x1xf32>
    %cst_24 = arith.constant 9.99999974E-6 : f32
    %76 = vector.broadcast %cst_24 : f32 to vector<8x1xf32>
    %77 = arith.mulf %76, %63 : vector<8x1xf32>
    %78 = arith.mulf %77, %63 : vector<8x1xf32>
    %79 = arith.addf %75, %78 : vector<8x1xf32>
    %80 = math.rsqrt %79 : vector<8x1xf32>
    %81 = arith.mulf %80, %1 : vector<8x1xf32>
    %82 = vector.broadcast %81 : vector<8x1xf32> to vector<8x256xf32>
    %83 = arith.mulf %70, %82 : vector<8x256xf32>
    %84 = vector.broadcast %2 : vector<8x1xf32> to vector<8x256xf32>
    %85 = arith.addf %83, %84 : vector<8x256xf32>
    %cst_25 = arith.constant 0.000000e+00 : f32
    %86 = vector.broadcast %cst_25 : f32 to vector<8x256xf32>
    %87 = arith.maximumf %85, %86 : vector<8x256xf32>
    %c0_26 = arith.constant 0 : index
    %c0_27 = arith.constant 0 : index
    %88 = vector.load %arg3[%c0_26, %c0_27] : memref<8x256xf32, #tpu.memory_space<vmem>>, vector<8x256xf32>
    tpu.vector_store %arg3[%c0_26, %c0_27], %87 {strides = array<i32>} : memref<8x256xf32, #tpu.memory_space<vmem>>, vector<8x256xf32>,
    return
  }
  func.func @transform_0(%arg0: i32) -> (i32, i32) {
    %c0_i32 = arith.constant 0 : i32
    %c0_i32_0 = arith.constant 0 : i32
    return %arg0, %c0_i32 : i32, i32
  }
  func.func @transform_1(%arg0: i32) -> (i32, i32) {
    %c0_i32 = arith.constant 0 : i32
    %c0_i32_0 = arith.constant 0 : i32
    return %arg0, %c0_i32 : i32, i32
  }
  func.func @transform_2(%arg0: i32) -> (i32, i32) {
    %c0_i32 = arith.constant 0 : i32
    %c0_i32_0 = arith.constant 0 : i32
    return %arg0, %c0_i32 : i32, i32
  }
}

</mosaic_0001>

<llo_original>
// kernel: tpu_custom_call.1
$region0: #{tpu_custom_call.1}
  #allocation0 [shape = 'u32[]', space=smem, size = 0x4, offset = 0x4, fixed_abs, tag = 'smem constant byte address 0x4 - core index']
  #allocation1 [shape = 'u32[72,128]{1,0:T(1,128)}', space=vmem, size = 0x9000, scoped, tag = 'internal scratch']
  %s0 = inlined_call_operand.hbm [shape: f32[8,256], index: 0, kind: input, shape index: {}]
  %s1 = inlined_call_operand.hbm [shape: f32[8,11], index: 1, kind: input, shape index: {}]
  %s2 = inlined_call_operand.hbm [shape: f32[8,256], index: 2, kind: output, shape index: {}]
  %s3 = sld [smem:[#allocation0]]
  $region26: #{tpu_custom_call.1} parent=0
    _
  %s5 = ssub.s32 1, %s3
  %s6 = scalar_select 0, %s5, %s3
  $region1: #{tpu_custom_call.1} parent=0
    #allocation2 [shape = 'u8[8192]{0}', space=vmem, size = 0x2000, scoped, tag = 'input window, operand 0, single buffered']
    #allocation3 [shape = 's32[1]{0}', space=sflag, size = 0x4, scoped, tag = 'scoped memory for tpu_custom_call.1']
    #allocation4 [shape = 's32[1]{0}', space=sflag, size = 0x4, scoped, tag = 'scoped memory for tpu_custom_call.1']
    #allocation5 [shape = 'u8[4096]{0}', space=vmem, size = 0x1000, scoped, tag = 'input window, operand 1, single buffered']
    #allocation6 [shape = 's32[1]{0}', space=sflag, size = 0x4, scoped, tag = 'scoped memory for tpu_custom_call.1']
    #allocation7 [shape = 'u8[8192]{0}', space=vmem, size = 0x2000, scoped, tag = 'output window, operand 0, single buffered']
    %7 = vsyncpa [#allocation3], 0
    %8 = vsyncpa [#allocation6], 0
    %9 = vsyncpa [#allocation4], 0
    // Predicated region
    $region2: #{tpu_custom_call.1} parent=1 // pred_check
      _
    $region3: #{tpu_custom_call.1} parent=1 // pred_check_branch
      %11 = sbr.rel (0) target = $region5
    $region4: #{tpu_custom_call.1} parent=1 // pred_region
      %13 = vsyncadd [#allocation3], 0
      %s15 = sshll.u32 %s0, 4
      %s16 = int_to_ptr.hbm [resolvable:$true] %s15
      %s17 = sshll.u32 [#allocation2], 4
      %s18 = int_to_ptr.vmem [resolvable:$true] %s17
      %20 = dma.hbm_to_vmem [thread:$0]  %s16, 256, %s18, [#allocation3]
    $region5: #{tpu_custom_call.1} parent=1 // pred_fallthru
      _
    // Predicated region
    $region6: #{tpu_custom_call.1} parent=1 // pred_check
      _
    $region7: #{tpu_custom_call.1} parent=1 // pred_check_branch
      %22 = sbr.rel (0) target = $region9
    $region8: #{tpu_custom_call.1} parent=1 // pred_region
      %24 = vsyncadd [#allocation6], 0
      %s26 = sshll.u32 %s1, 4
      %s27 = int_to_ptr.hbm [resolvable:$true] %s26
      %s28 = sshll.u32 [#allocation5], 4
      %s29 = int_to_ptr.vmem [resolvable:$true] %s28
      %31 = dma.hbm_to_vmem [thread:$0]  %s27, 128, %s29, [#allocation6]
    $region9: #{tpu_custom_call.1} parent=1 // pred_fallthru
      _
    // Predicated region
    $region10: #{tpu_custom_call.1} parent=1 // pred_check
      _
    $region11: #{tpu_custom_call.1} parent=1 // pred_check_branch
      %33 = sbr.rel (0) target = $region13
    $region12: #{tpu_custom_call.1} parent=1 // pred_region
      %35 = dma.done [#allocation3], 256
    $region13: #{tpu_custom_call.1} parent=1 // pred_fallthru
      _
    // Predicated region
    $region14: #{tpu_custom_call.1} parent=1 // pred_check
      _
    $region15: #{tpu_custom_call.1} parent=1 // pred_check_branch
      %37 = sbr.rel (0) target = $region17
    $region16: #{tpu_custom_call.1} parent=1 // pred_region
      %39 = dma.done [#allocation6], 128
    $region17: #{tpu_custom_call.1} parent=1 // pred_fallthru
      _
    %v40 = vld [vmem:[#allocation2] sm:$0xff]
    %v41 = vld [vmem:[#allocation2 + $0x8] sm:$0xff]
    %v42 = vld [vmem:[#allocation5] sm:$0xff]
    %v43 = vadd.f32 %v40, %v41
    %44 = vadd.xlane.f32.xlu0 %v43
    %v45 = vpop.xlane.xlu0 %44
    %v46 = vrcp.pop 256.0
    %v47 = vmul.f32 256.0, %v46
    %v48 = vsub.f32 1.0, %v47
    %v49 = vmul.f32 %v46, %v48
    %v50 = vadd.f32 %v46, %v49
    %vm51 = vweird.f32 %v46
    %v52 = vsel %vm51, %v46, %v50
    %v53 = vmul.f32 %v45, %v52
    %v54 = vsub.f32 %v40, %v53
    %v55 = vsub.f32 %v41, %v53
    %v56 = vmul.f32 %v54, %v54
    %v57 = vmul.f32 %v55, %v55
    %v58 = vadd.f32 %v56, %v57
    %59 = vadd.xlane.f32.xlu0 %v58
    %v60 = vpop.xlane.xlu0 %59
    %v61 = vmul.f32 %v60, %v52
    %v62 = vadd.f32 %v61, 1e-05
    %v63 = vrsqrt.pop %v62
    %v64 = vmul.f32 %v63, %v62
    %v65 = vmul.f32 %v64, %v63
    %v66 = vmul.f32 0.5, %v65
    %v67 = vsub.f32 1.5, %v66
    %v68 = vmul.f32 %v63, %v67
    %vm69 = vweird.f32 %v62
    %vm70 = vweird.f32 %v63
    %vm71 = vmor %vm69, %vm70
    %v72 = vsel %vm71, %v63, %v68
    %v73 = vmul.f32 %v72, %v42
    %75 = vset.pattern.permute.xlu0 0
    %76 = vperm.xlu0 %75, %v73
    %v77 = vpop.permute.xlu0 %76
    %v79 = vmul.f32 %v54, %v77
    %v80 = vmul.f32 %v55, %v77
    %82 = vset.pattern.permute.xlu0 1
    %83 = vperm.xlu0 %82, %v42
    %v84 = vpop.permute.xlu0 %83
    %v86 = vadd.f32 %v79, %v84
    %v87 = vadd.f32 %v80, %v84
    %v88 = vmul.f32 %v73, %v73
    %v89 = vmul.f32 %v88, %v61
    %v90 = vmul.f32 %v42, %v42
    %92 = vrot.lane.b32.xlu0 %v90, 127
    %v93 = vpop.permute.xlu0 %92
    %v95 = vadd.f32 %v89, %v93
    %v96 = vrsqrt.pop %v95
    %v97 = vmul.f32 %v96, %v95
    %v98 = vmul.f32 %v97, %v96
    %v99 = vmul.f32 0.5, %v98
    %v100 = vsub.f32 1.5, %v99
    %v101 = vmul.f32 %v96, %v100
    %v102 = vmul.f32 %v95, %v101
    %vm103 = vcmp.eq.f32.partialorder %v95, inf
    %v104 = vsel %vm103, %v95, %v102
    %vm105 = vcmp.eq.f32.partialorder %v95, 0.0
    %v106 = vand.u32 %v95, 2147483648
    %v107 = vsel %vm105, %v106, %v104
    %v108 = vrot.slane %v107, 5
    %110 = vrot.lane.b32.xlu0 %v108, 4
    %v111 = vpop.permute.xlu0 %110
    %v113 = vmul.f32 %v42, %v111
    %115 = vrot.lane.b32.xlu0 %v113, 127
    %v116 = vpop.permute.xlu0 %115
    %v118 = vadd.f32 %v42, %v116
    %v119 = vrot.slane %v107, 6
    %121 = vrot.lane.b32.xlu0 %v119, 5
    %v122 = vpop.permute.xlu0 %121
    %v124 = vmul.f32 %v42, %v122
    %126 = vrot.lane.b32.xlu0 %v124, 126
    %v127 = vpop.permute.xlu0 %126
    %v129 = vadd.f32 %v118, %v127
    %v130 = vrot.slane %v107, 7
    %132 = vrot.lane.b32.xlu0 %v130, 6
    %v133 = vpop.permute.xlu0 %132
    %v135 = vmul.f32 %v42, %v133
    %137 = vrot.lane.b32.xlu0 %v135, 125
    %v138 = vpop.permute.xlu0 %137
    %v140 = vadd.f32 %v129, %v138
    %142 = vrot.lane.b32.xlu0 %v107, 7
    %v143 = vpop.permute.xlu0 %142
    %v145 = vmul.f32 %v42, %v143
    %147 = vrot.lane.b32.xlu0 %v145, 124
    %v148 = vpop.permute.xlu0 %147
    %v150 = vadd.f32 %v140, %v148
    %v151 = vrot.slane %v107, 1
    %153 = vrot.lane.b32.xlu0 %v151, 8
    %v154 = vpop.permute.xlu0 %153
    %v156 = vmul.f32 %v42, %v154
    %158 = vrot.lane.b32.xlu0 %v156, 123
    %v159 = vpop.permute.xlu0 %158
    %v161 = vadd.f32 %v150, %v159
    %v162 = vrot.slane %v107, 2
    %164 = vrot.lane.b32.xlu0 %v162, 9
    %v165 = vpop.permute.xlu0 %164
    %v167 = vmul.f32 %v42, %v165
    %169 = vrot.lane.b32.xlu0 %v167, 122
    %v170 = vpop.permute.xlu0 %169
    %v172 = vadd.f32 %v161, %v170
    %v173 = vrot.slane %v107, 3
    %175 = vrot.lane.b32.xlu0 %v173, 10
    %v176 = vpop.permute.xlu0 %175
    %v178 = vmul.f32 %v42, %v176
    %180 = vrot.lane.b32.xlu0 %v178, 121
    %v181 = vpop.permute.xlu0 %180
    %v183 = vadd.f32 %v172, %v181
    %v184 = vsub.f32 0.0, %v42
    %186 = vrot.lane.b32.xlu0 %v183, 127
    %v187 = vpop.permute.xlu0 %186
    %v189 = vmul.f32 %v184, %v187
    %v190 = vmul.f32 %v189, 1.442695
    %v191 = vpow.pop %v190
    %v192 = vadd.f32 %v191, 1.0
    %v193 = vrcp.pop %v192
    %v194 = vmul.f32 %v192, %v193
    %v195 = vsub.f32 1.0, %v194
    %v196 = vmul.f32 %v193, %v195
    %v197 = vadd.f32 %v193, %v196
    %vm198 = vweird.f32 %v192
    %vm199 = vweird.f32 %v193
    %vm200 = vmor %vm198, %vm199
    %v201 = vsel %vm200, %v193, %v197
    %v202 = vand.u32 2147483647, %v192
    %vm203 = vcmp.eq.f32.partialorder %v202, 8.507059e+37
    %v204 = vand.u32 %v192, 2147483648
    %v205 = vor.u32 1.1754944e-38, %v204
    %v206 = vsel %vm203, %v205, %v201
    %v207 = vmul.f32 1.0, %v206
    %v208 = vmul.f32 %v40, %v86
    %v209 = vmul.f32 %v41, %v87
    %v210 = vadd.f32 %v208, %v209
    %211 = vadd.xlane.f32.xlu0 %v210
    %v212 = vpop.xlane.xlu0 %211
    %v213 = vmul.f32 %v212, %v52
    %v214 = vsub.f32 %v208, %v213
    %v215 = vsub.f32 %v209, %v213
    %v216 = vmul.f32 %v214, %v214
    %v217 = vmul.f32 %v215, %v215
    %v218 = vadd.f32 %v216, %v217
    %219 = vadd.xlane.f32.xlu0 %v218
    %v220 = vpop.xlane.xlu0 %219
    %v221 = vmul.f32 %v220, %v52
    %v222 = vmul.f32 %v207, 1e-05
    %v223 = vmul.f32 %v222, %v207
    %v224 = vadd.f32 %v221, %v223
    %v225 = vrsqrt.pop %v224
    %v226 = vmul.f32 %v225, %v224
    %v227 = vmul.f32 %v226, %v225
    %v228 = vmul.f32 0.5, %v227
    %v229 = vsub.f32 1.5, %v228
    %v230 = vmul.f32 %v225, %v229
    %vm231 = vweird.f32 %v224
    %vm232 = vweird.f32 %v225
    %vm233 = vmor %vm231, %vm232
    %v234 = vsel %vm233, %v225, %v230
    %235 = vrot.lane.b32.xlu0 %v42, 2
    %v236 = vpop.permute.xlu0 %235
    %v238 = vmul.f32 %v234, %v236
    %240 = vset.pattern.permute.xlu0 2
    %241 = vperm.xlu0 %240, %v238
    %v242 = vpop.permute.xlu0 %241
    %v244 = vmul.f32 %v214, %v242
    %v245 = vmul.f32 %v215, %v242
    %v246 = vadd.f32 %v244, %v84
    %v247 = vadd.f32 %v245, %v84
    %v248 = vmax.f32 %v246, 0.0
    %v249 = vmax.f32 %v247, 0.0
    %250 = vst [vmem:[#allocation7] sm:$0xff] %v248
    %251 = vst [vmem:[#allocation7 + $0x8] sm:$0xff] %v249
    // Predicated region
    $region18: #{tpu_custom_call.1} parent=1 // pred_check
      _
    $region19: #{tpu_custom_call.1} parent=1 // pred_check_branch
      %253 = sbr.rel (0) target = $region21
    $region20: #{tpu_custom_call.1} parent=1 // pred_region
      %255 = vsyncadd [#allocation4], 0
      %s257 = sshll.u32 [#allocation7], 4
      %s258 = int_to_ptr.vmem [resolvable:$true] %s257
      %s259 = sshll.u32 %s2, 4
      %s260 = int_to_ptr.hbm [resolvable:$true] %s259
      %262 = dma.vmem_to_hbm [thread:$0]  %s258, 256, %s260, [#allocation4]
    $region21: #{tpu_custom_call.1} parent=1 // pred_fallthru
      _
    // Predicated region
    $region22: #{tpu_custom_call.1} parent=1 // pred_check
      _
    $region23: #{tpu_custom_call.1} parent=1 // pred_check_branch
      %264 = sbr.rel (0) target = $region25
    $region24: #{tpu_custom_call.1} parent=1 // pred_region
      %266 = dma.done [#allocation4], 256
    $region25: #{tpu_custom_call.1} parent=1 // pred_fallthru
      _
    %267 = vsyncpa [#allocation3], 1
    %268 = vsyncpa [#allocation6], 1
    %269 = vsyncpa [#allocation4], 1

</llo_original>
